<compile_context>
chip_gen: v7x
topology: tpu7x:2x2x1
jax: 0.10.0
libtpu: 0.0.40
codegen_flags: <defaults>
</compile_context>

<pallas_src>
import jax
import jax.numpy as jnp
import numpy as np
from jax.experimental import pallas as pl
from jax.experimental.pallas import tpu as pltpu

DROP_P = 0.1
KEEP_P = 1.0 - DROP_P
# uniform uint32 < threshold  <=>  drop (prob ~0.1).  Plain numpy scalar so it
# lowers as a literal constant.
DROP_THRESHOLD = np.uint32(int(DROP_P * (2 ** 32)))
INV_KEEP = np.float32(1.0 / KEEP_P)

# Integer-hash constants (splitmix / murmur-style mixing), numpy uint32 scalars.
_C1 = np.uint32(0x9E3779B9)
_C2 = np.uint32(0x85EBCA6B)
_C3 = np.uint32(0xC2B2AE35)
_C4 = np.uint32(0x7FEB352D)
_C5 = np.uint32(0x846CA68B)

SUBLANE = 8


def _round_up(a, b):
    return ((a + b - 1) // b) * b


def _dropout_keep_mask(seed_u32, row0, shape):
    """Stateless per-element keep mask with P(keep) ~= 1 - DROP_P.

    Built from plain jnp/lax ops (iota + integer mul/xor/shift), so it lowers
    both through Mosaic (VPU integer ops) and in interpret mode, unlike the
    stateful pltpu PRNG.  Seeded by (seed, global_row, col) so every batch
    tile gets an independent, decorrelated mask.
    """
    rows = (jax.lax.broadcasted_iota(jnp.int32, shape, 0) + row0).astype(jnp.uint32)
    cols = jax.lax.broadcasted_iota(jnp.int32, shape, 1).astype(jnp.uint32)
    x = rows * _C1 + cols * _C2 + seed_u32 * _C3
    # lowbias32-style finalizer: a handful of cheap VPU ops.
    x = x ^ (x >> 16)
    x = x * _C4
    x = x ^ (x >> 15)
    x = x * _C5
    x = x ^ (x >> 16)
    return x >= DROP_THRESHOLD


def basic_network_kernel(seed_ref, x_ref, w1_ref, b1_ref, w2_ref, b2_ref, o_ref):
    tb = x_ref.shape[0]

    # fc1: bf16 MXU operands (weights arrive pre-cast from the wrapper),
    # f32 accumulation.  (tb, In) @ (In, H) + (1, H)
    h = jnp.dot(x_ref[...].astype(jnp.bfloat16), w1_ref[...],
                preferred_element_type=jnp.float32) + b1_ref[...]

    # dropout(p=0.1) (F.dropout defaults to training=True, so it is active),
    # fused with relu:  relu(dropout(h)) == where(keep & (h > 0), h/keep_p, 0)
    keep = _dropout_keep_mask(seed_ref[0].astype(jnp.uint32),
                              pl.program_id(0) * tb, h.shape)
    h = jnp.where(jnp.logical_and(keep, h > 0.0), h * INV_KEEP, 0.0)

    # fc2: bf16 MXU operands, f32 accumulation.  (tb, H) @ (H, Out) + (1, Out)
    y = jnp.dot(h.astype(jnp.bfloat16), w2_ref[...],
                preferred_element_type=jnp.float32) + b2_ref[...]

    # Exact f32 sigmoid: exp hits the EUP slot, and precision is free since the
    # kernel is HBM-bound.  Also keeps any ragged-block garbage finite.
    o_ref[...] = 1.0 / (1.0 + jnp.exp(-y))


def basic_network(x, w1, b1, w2, b2, seed, *, tile_b=4096):
    """x: (B, In) f32; w1: (In, H); b1: (1, H); w2: (H, Out); b2: (1, Out)."""
    B, In = x.shape
    H, Out = w2.shape

    # Batch tile: multiple of 8 sublanes, at most the (rounded-up) batch.
    tb = min(_round_up(B, SUBLANE), _round_up(tile_b, SUBLANE))
    # v7x has 2 TensorCores: prefer >= 2 grid steps when the batch allows it.
    if pl.cdiv(B, tb) < 2 and B > SUBLANE:
        tb = _round_up(pl.cdiv(B, 2), SUBLANE)
    grid = (pl.cdiv(B, tb),)          # ragged last block handled by Pallas

    # Weights are block-resident: cast to bf16 once here instead of every step.
    w1_bf = w1.astype(jnp.bfloat16)
    w2_bf = w2.astype(jnp.bfloat16)

    seed_arr = jnp.asarray([seed], dtype=jnp.int32)

    grid_spec = pltpu.PrefetchScalarGridSpec(
        num_scalar_prefetch=1,        # seed -> SMEM, passed to index_maps
        grid=grid,
        in_specs=[
            pl.BlockSpec((tb, In), lambda i, seed: (i, 0)),   # x batch tile
            pl.BlockSpec((In, H), lambda i, seed: (0, 0)),    # w1 (resident, bf16)
            pl.BlockSpec((1, H), lambda i, seed: (0, 0)),     # b1 (resident, f32)
            pl.BlockSpec((H, Out), lambda i, seed: (0, 0)),   # w2 (resident, bf16)
            pl.BlockSpec((1, Out), lambda i, seed: (0, 0)),   # b2 (resident, f32)
        ],
        out_specs=pl.BlockSpec((tb, Out), lambda i, seed: (i, 0)),  # unpadded
    )

    # Rough per-step VMEM estimate (f32 bytes): double-buffered x/out tiles,
    # intermediates, plus resident bf16 weights.  Only raise the scoped-VMEM
    # limit when actually needed (v5e defaults to 16 MiB).
    vmem_est = 4 * tb * (2 * In + 3 * H + 2 * Out) + 2 * (In * H + H * Out)
    compiler_params = pltpu.CompilerParams(
        dimension_semantics=("parallel",),   # split batch grid over 2 TCs (v7x)
        vmem_limit_bytes=(min(2 * vmem_est, 48 * 1024 * 1024)
                          if vmem_est > 8 * 1024 * 1024 else None),
    )

    return pl.pallas_call(
        basic_network_kernel,
        out_shape=jax.ShapeDtypeStruct((B, Out), jnp.float32),
        grid_spec=grid_spec,
        compiler_params=compiler_params,
    )(seed_arr, x, w1_bf, b1, w2_bf, b2)


if __name__ == "__main__":
    # TrainConfig(input_size=32, hidden_size=64, output_size=16, ...)
    batch, input_size, hidden_size, output_size = 8, 32, 64, 16

    key = jax.random.PRNGKey(0)
    kx, k1, k2, k3, k4 = jax.random.split(key, 5)

    x = jax.random.normal(kx, (batch, input_size), dtype=jnp.float32)

    # Deterministic parameter init (uniform, like nn.Linear's default range).
    bound1 = 1.0 / (input_size ** 0.5)
    w1 = jax.random.uniform(k1, (input_size, hidden_size), jnp.float32,
                            -bound1, bound1)
    b1 = jax.random.uniform(k2, (1, hidden_size), jnp.float32, -bound1, bound1)

    bound2 = 1.0 / (hidden_size ** 0.5)
    w2 = jax.random.uniform(k3, (hidden_size, output_size), jnp.float32,
                            -bound2, bound2)
    b2 = jax.random.uniform(k4, (1, output_size), jnp.float32, -bound2, bound2)

    out = basic_network(x, w1, b1, w2, b2, seed=0)
    out = jax.block_until_ready(out)

    assert out.shape == (batch, output_size)
    assert bool(jnp.all((out >= 0.0) & (out <= 1.0)))
    assert bool(jnp.all(jnp.isfinite(out)))
    print("KERNEL_OK")
</pallas_src>

<mosaic_0001>
module attributes {stable_mosaic.version = 11 : i64} {
  func.func @basic_network_kernel(%arg0: i32, %arg1: memref<1xi32, #tpu.memory_space<smem>>, %arg2: memref<8x32xf32, #tpu.memory_space<vmem>>, %arg3: memref<32x64xbf16, #tpu.memory_space<vmem>>, %arg4: memref<1x64xf32, #tpu.memory_space<vmem>>, %arg5: memref<64x16xbf16, #tpu.memory_space<vmem>>, %arg6: memref<1x16xf32, #tpu.memory_space<vmem>>, %arg7: memref<8x16xf32, #tpu.memory_space<vmem>>) attributes {dimension_semantics = [#tpu.dimension_semantics<parallel>], iteration_bounds = array<i64: 1>, scalar_prefetch = 1 : i64, scratch_operands = 0 : i64, tpu.core_type = #tpu.core_type<tc>, window_params = [{transform_indices = @transform_0, window_bounds = array<i64: 8, 32>}, {pipeline_mode = #tpu.pipeline_mode<synchronous>, transform_indices = @transform_1, window_bounds = array<i64: 32, 64>}, {pipeline_mode = #tpu.pipeline_mode<synchronous>, transform_indices = @transform_2, window_bounds = array<i64: 1, 64>}, {pipeline_mode = #tpu.pipeline_mode<synchronous>, transform_indices = @transform_3, window_bounds = array<i64: 64, 16>}, {pipeline_mode = #tpu.pipeline_mode<synchronous>, transform_indices = @transform_4, window_bounds = array<i64: 1, 16>}, {transform_indices = @transform_5, window_bounds = array<i64: 8, 16>}]} {
    %c0 = arith.constant 0 : index
    %c0_0 = arith.constant 0 : index
    %0 = vector.load %arg2[%c0, %c0_0] : memref<8x32xf32, #tpu.memory_space<vmem>>, vector<8x32xf32>
    %1 = arith.truncf %0 : vector<8x32xf32> to vector<8x32xbf16>
    %c0_1 = arith.constant 0 : index
    %c0_2 = arith.constant 0 : index
    %2 = vector.load %arg3[%c0_1, %c0_2] : memref<32x64xbf16, #tpu.memory_space<vmem>>, vector<32x64xbf16>
    %cst = arith.constant dense<0.000000e+00> : vector<8x64xf32>
    %3 = tpu.matmul %1, %2, %cst {dimension_numbers = #tpu.dot_dimension_numbers<[1], [0], [0], [1], [0, 0, 1, 1], [], []>} : vector<8x32xbf16>, vector<32x64xbf16>, vector<8x64xf32> -> vector<8x64xf32>
    %c0_3 = arith.constant 0 : index
    %c0_4 = arith.constant 0 : index
    %4 = vector.load %arg4[%c0_3, %c0_4] : memref<1x64xf32, #tpu.memory_space<vmem>>, vector<1x64xf32>
    %5 = vector.broadcast %4 : vector<1x64xf32> to vector<8x64xf32>
    %6 = arith.addf %3, %5 : vector<8x64xf32>
    %c0_5 = arith.constant 0 : index
    %7 = memref.load %arg1[%c0_5] : memref<1xi32, #tpu.memory_space<smem>>
    %c8_i32 = arith.constant 8 : i32
    %8 = arith.muli %arg0, %c8_i32 : i32
    %9 = tpu.iota {dimensions = array<i32: 0>} : vector<8x64xi32>
    %10 = vector.broadcast %8 : i32 to vector<8x64xi32>
    %11 = arith.addi %9, %10 : vector<8x64xi32>
    %12 = tpu.iota {dimensions = array<i32: 1>} : vector<8x64xi32>
    %c-1640531527_i32 = arith.constant -1640531527 : i32
    %13 = vector.broadcast %c-1640531527_i32 : i32 to vector<8x64xi32>
    %14 = arith.muli %11, %13 : vector<8x64xi32>
    %c-2048144789_i32 = arith.constant -2048144789 : i32
    %15 = vector.broadcast %c-2048144789_i32 : i32 to vector<8x64xi32>
    %16 = arith.muli %12, %15 : vector<8x64xi32>
    %17 = arith.addi %14, %16 : vector<8x64xi32>
    %c-1028477387_i32 = arith.constant -1028477387 : i32
    %18 = arith.muli %7, %c-1028477387_i32 : i32
    %19 = vector.broadcast %18 : i32 to vector<8x64xi32>
    %20 = arith.addi %17, %19 : vector<8x64xi32>
    %c16_i32 = arith.constant 16 : i32
    %21 = vector.broadcast %c16_i32 : i32 to vector<8x64xi32>
    %22 = arith.shrui %20, %21 : vector<8x64xi32>
    %23 = arith.xori %20, %22 : vector<8x64xi32>
    %c2146121005_i32 = arith.constant 2146121005 : i32
    %24 = vector.broadcast %c2146121005_i32 : i32 to vector<8x64xi32>
    %25 = arith.muli %23, %24 : vector<8x64xi32>
    %c15_i32 = arith.constant 15 : i32
    %26 = vector.broadcast %c15_i32 : i32 to vector<8x64xi32>
    %27 = arith.shrui %25, %26 : vector<8x64xi32>
    %28 = arith.xori %25, %27 : vector<8x64xi32>
    %c-2073254261_i32 = arith.constant -2073254261 : i32
    %29 = vector.broadcast %c-2073254261_i32 : i32 to vector<8x64xi32>
    %30 = arith.muli %28, %29 : vector<8x64xi32>
    %c16_i32_6 = arith.constant 16 : i32
    %31 = vector.broadcast %c16_i32_6 : i32 to vector<8x64xi32>
    %32 = arith.shrui %30, %31 : vector<8x64xi32>
    %33 = arith.xori %30, %32 : vector<8x64xi32>
    %c429496729_i32 = arith.constant 429496729 : i32
    %34 = vector.broadcast %c429496729_i32 : i32 to vector<8x64xi32>
    %35 = arith.cmpi uge, %33, %34 : vector<8x64xi32>
    %cst_7 = arith.constant 0.000000e+00 : f32
    %36 = vector.broadcast %cst_7 : f32 to vector<8x64xf32>
    %37 = arith.cmpf ogt, %6, %36 : vector<8x64xf32>
    %38 = arith.andi %35, %37 : vector<8x64xi1>
    %cst_8 = arith.constant 1.11111116 : f32
    %39 = vector.broadcast %cst_8 : f32 to vector<8x64xf32>
    %40 = arith.mulf %6, %39 : vector<8x64xf32>
    %cst_9 = arith.constant 0.000000e+00 : f32
    %41 = vector.broadcast %cst_9 : f32 to vector<8x64xf32>
    %42 = arith.select %38, %40, %41 : vector<8x64xi1>, vector<8x64xf32>
    %43 = arith.truncf %42 : vector<8x64xf32> to vector<8x64xbf16>
    %c0_10 = arith.constant 0 : index
    %c0_11 = arith.constant 0 : index
    %44 = vector.load %arg5[%c0_10, %c0_11] : memref<64x16xbf16, #tpu.memory_space<vmem>>, vector<64x16xbf16>
    %cst_12 = arith.constant dense<0.000000e+00> : vector<8x16xf32>
    %45 = tpu.matmul %43, %44, %cst_12 {dimension_numbers = #tpu.dot_dimension_numbers<[1], [0], [0], [1], [0, 0, 1, 1], [], []>} : vector<8x64xbf16>, vector<64x16xbf16>, vector<8x16xf32> -> vector<8x16xf32>
    %c0_13 = arith.constant 0 : index
    %c0_14 = arith.constant 0 : index
    %46 = vector.load %arg6[%c0_13, %c0_14] : memref<1x16xf32, #tpu.memory_space<vmem>>, vector<1x16xf32>
    %47 = vector.broadcast %46 : vector<1x16xf32> to vector<8x16xf32>
    %48 = arith.addf %45, %47 : vector<8x16xf32>
    %cst_15 = arith.constant 0.000000e+00 : f32
    %49 = vector.broadcast %cst_15 : f32 to vector<8x16xf32>
    %50 = arith.subf %49, %48 : vector<8x16xf32>
    %51 = math.exp %50 : vector<8x16xf32>
    %cst_16 = arith.constant 1.000000e+00 : f32
    %52 = vector.broadcast %cst_16 : f32 to vector<8x16xf32>
    %53 = arith.addf %52, %51 : vector<8x16xf32>
    %cst_17 = arith.constant 1.000000e+00 : f32
    %54 = vector.broadcast %cst_17 : f32 to vector<8x16xf32>
    %55 = arith.divf %54, %53 : vector<8x16xf32>
    %c0_18 = arith.constant 0 : index
    %c0_19 = arith.constant 0 : index
    %56 = vector.load %arg7[%c0_18, %c0_19] : memref<8x16xf32, #tpu.memory_space<vmem>>, vector<8x16xf32>
    tpu.vector_store %arg7[%c0_18, %c0_19], %55 {strides = array<i32>} : memref<8x16xf32, #tpu.memory_space<vmem>>, vector<8x16xf32>,
    return
  }
  func.func @transform_0(%arg0: i32, %arg1: memref<1xi32, #tpu.memory_space<smem>>) -> (i32, i32) {
    %c0_i32 = arith.constant 0 : i32
    %c0_i32_0 = arith.constant 0 : i32
    return %arg0, %c0_i32 : i32, i32
  }
  func.func @transform_1(%arg0: i32, %arg1: memref<1xi32, #tpu.memory_space<smem>>) -> (i32, i32) {
    %c0_i32 = arith.constant 0 : i32
    %c0_i32_0 = arith.constant 0 : i32
    %c0_i32_1 = arith.constant 0 : i32
    return %c0_i32, %c0_i32_0 : i32, i32
  }
  func.func @transform_2(%arg0: i32, %arg1: memref<1xi32, #tpu.memory_space<smem>>) -> (i32, i32) {
    %c0_i32 = arith.constant 0 : i32
    %c0_i32_0 = arith.constant 0 : i32
    %c0_i32_1 = arith.constant 0 : i32
    return %c0_i32, %c0_i32_0 : i32, i32
  }
  func.func @transform_3(%arg0: i32, %arg1: memref<1xi32, #tpu.memory_space<smem>>) -> (i32, i32) {
    %c0_i32 = arith.constant 0 : i32
    %c0_i32_0 = arith.constant 0 : i32
    %c0_i32_1 = arith.constant 0 : i32
    return %c0_i32, %c0_i32_0 : i32, i32
  }
  func.func @transform_4(%arg0: i32, %arg1: memref<1xi32, #tpu.memory_space<smem>>) -> (i32, i32) {
    %c0_i32 = arith.constant 0 : i32
    %c0_i32_0 = arith.constant 0 : i32
    %c0_i32_1 = arith.constant 0 : i32
    return %c0_i32, %c0_i32_0 : i32, i32
  }
  func.func @transform_5(%arg0: i32, %arg1: memref<1xi32, #tpu.memory_space<smem>>) -> (i32, i32) {
    %c0_i32 = arith.constant 0 : i32
    %c0_i32_0 = arith.constant 0 : i32
    return %arg0, %c0_i32 : i32, i32
  }
}

</mosaic_0001>

<llo_original>
// kernel: tpu_custom_call.1
$region0: #{tpu_custom_call.1}
  #allocation0 [shape = 'u32[]', space=smem, size = 0x4, offset = 0x4, fixed_abs, tag = 'smem constant byte address 0x4 - core index']
  #allocation1 [shape = 'u32[144,128]{1,0:T(1,128)}', space=vmem, size = 0x12000, scoped, tag = 'internal scratch']
  #allocation2 [shape = 's32[1]{0}', space=sflag, size = 0x4, scoped, tag = 'scoped memory for tpu_custom_call.1']
  #allocation3 [shape = 's32[1]{0:T(128)S(6)}', space=smem, size = 0x200, scoped, tag = 'prefetched SMEM operand 0']
  %s0 = inlined_call_operand.<no memory space> [shape: s32[1], index: 0, kind: input, shape index: {}]
  %s1 = inlined_call_operand.vmem [shape: f32[8,32], index: 1, kind: input, shape index: {}]
  %s2 = inlined_call_operand.vmem [shape: bf16[32,64], index: 2, kind: input, shape index: {}]
  %s3 = inlined_call_operand.vmem [shape: f32[1,64], index: 3, kind: input, shape index: {}]
  %s4 = inlined_call_operand.vmem [shape: bf16[64,16], index: 4, kind: input, shape index: {}]
  %s5 = inlined_call_operand.vmem [shape: f32[1,16], index: 5, kind: input, shape index: {}]
  %s6 = inlined_call_operand.hbm [shape: f32[8,16], index: 6, kind: output, shape index: {}]
  %s7 = sld [smem:[#allocation0]]
  $region30: #{tpu_custom_call.1} parent=0
    _
  %s9 = ssub.s32 1, %s7
  %s10 = scalar_select 0, %s9, %s7
  %11 = sst [smem:[#allocation3]] %s0
  $region1: #{tpu_custom_call.1} parent=0
    #allocation4 [shape = 'u8[4096]{0}', space=vmem, size = 0x1000, scoped, tag = 'output window, operand 0, single buffered']
    #allocation5 [shape = 's32[1]{0}', space=sflag, size = 0x4, scoped, tag = 'scoped memory for tpu_custom_call.1']
    %12 = vsyncpa [#allocation5], 0
    // Predicated region
    $region2: #{tpu_custom_call.1} parent=1 // pred_check
      _
    $region3: #{tpu_custom_call.1} parent=1 // pred_check_branch
      %14 = sbr.rel (0) target = $region5
    $region4: #{tpu_custom_call.1} parent=1 // pred_region
      _
    $region5: #{tpu_custom_call.1} parent=1 // pred_fallthru
      _
    // Predicated region
    $region6: #{tpu_custom_call.1} parent=1 // pred_check
      _
    $region7: #{tpu_custom_call.1} parent=1 // pred_check_branch
      %16 = sbr.rel (0) target = $region9
    $region8: #{tpu_custom_call.1} parent=1 // pred_region
      _
    $region9: #{tpu_custom_call.1} parent=1 // pred_fallthru
      _
    // Predicated region
    $region10: #{tpu_custom_call.1} parent=1 // pred_check
      _
    $region11: #{tpu_custom_call.1} parent=1 // pred_check_branch
      %18 = sbr.rel (0) target = $region13
    $region12: #{tpu_custom_call.1} parent=1 // pred_region
      _
    $region13: #{tpu_custom_call.1} parent=1 // pred_fallthru
      _
    // Predicated region
    $region14: #{tpu_custom_call.1} parent=1 // pred_check
      _
    $region15: #{tpu_custom_call.1} parent=1 // pred_check_branch
      %20 = sbr.rel (0) target = $region17
    $region16: #{tpu_custom_call.1} parent=1 // pred_region
      _
    $region17: #{tpu_custom_call.1} parent=1 // pred_fallthru
      _
    // Predicated region
    $region18: #{tpu_custom_call.1} parent=1 // pred_check
      _
    $region19: #{tpu_custom_call.1} parent=1 // pred_check_branch
      %22 = sbr.rel (0) target = $region21
    $region20: #{tpu_custom_call.1} parent=1 // pred_region
      _
    $region21: #{tpu_custom_call.1} parent=1 // pred_fallthru
      _
    %v24 = vld [vmem:[%s1] sm:$0xff]
    %v25 = vpack.c.bf16 %v24, %v24
    %v26 = vld [vmem:[%s2] sm:$0xf]
    %v27 = vld [vmem:[%s2 + $0x4] sm:$0xf]
    %v28 = vld [vmem:[%s2 + $0x8] sm:$0xf]
    %v29 = vld [vmem:[%s2 + $0xc] sm:$0xf]
    %v30 = vld [vmem:[%s3] sm:$0x1]
    %v32 = vlaneseq
    %v33 = vshrl.u32 %v32, 7
    %v34 = vsub.s32 0, %v33
    %v35 = vrot.slane %v30, %v34
    %v41 = vunpack.c.l.b16 %v26
    %v42 = vunpack.c.l.b16 %v27
    %v43 = vunpack.c.l.b16 %v28
    %v44 = vunpack.c.l.b16 %v29
    %v45 = vpack.c.b16 %v42, %v41
    %v46 = vpack.c.b16 %v44, %v43
    %vm49 = vcmask 261120
    %v51 = vsel %vm49, %v25, 0
    %53 = vmatprep.subr.bf16.mxu0 0
    %54 = vmatpush1.bf16.msra.mxu0 %v45
    %55 = vmatprep.subr.bf16.mxu0 0
    %56 = vmatpush1.bf16.msra.mxu0 %v46
    %57 = vmatprep.subr.bf16.mxu0 0
    %58 = vmatpush1.bf16.msra.mxu0 0
    %59 = vmatprep.subr.bf16.mxu0 0
    %60 = vmatpush1.bf16.msra.mxu0 0
    %61 = vmatprep.subr.bf16.mxu0 0
    %62 = vmatpush1.bf16.msra.mxu0 0
    %63 = vmatprep.subr.bf16.mxu0 0
    %64 = vmatpush1.bf16.msra.mxu0 0
    %65 = vmatprep.subr.bf16.mxu0 0
    %66 = vmatpush1.bf16.msra.mxu0 0
    %67 = vmatprep.subr.bf16.mxu0 0
    %68 = vmatpush1.bf16.msra.mxu0 0
    %69 = vmatprep.subr.bf16.mxu0 0
    %70 = vmatpush1.bf16.msra.mxu0 0
    %71 = vmatprep.subr.bf16.mxu0 0
    %72 = vmatpush1.bf16.msra.mxu0 0
    %73 = vmatprep.subr.bf16.mxu0 0
    %74 = vmatpush1.bf16.msra.mxu0 0
    %75 = vmatprep.subr.bf16.mxu0 0
    %76 = vmatpush1.bf16.msra.mxu0 0
    %77 = vmatprep.subr.bf16.mxu0 0
    %78 = vmatpush1.bf16.msra.mxu0 0
    %79 = vmatprep.subr.bf16.mxu0 0
    %80 = vmatpush1.bf16.msra.mxu0 0
    %81 = vmatprep.subr.bf16.mxu0 0
    %82 = vmatpush1.bf16.msra.mxu0 0
    %83 = vmatprep.subr.bf16.mxu0 0
    %84 = vmatpush1.bf16.msra.mxu0 0
    %85 = vmatprep.mubr.bf16.mxu0 0
    %86 = vmatmul.mubr.bf16.gmra.mrb[0].mxu0 %v51
    %v87 = vpop.f32.mrb[0].mxu0
    %v88 = vadd.f32 %v35, %v87
    %v89 = vpop.f32.mrb[0].mxu0
    %v90 = vpop.f32.mrb[0].mxu0
    %v91 = vpop.f32.mrb[0].mxu0
    %92 = vdwg.mxu0
    %s93 = sld [smem:[#allocation3]]
    %s94 = smul.u32 0, 8
    %v95 = vlaneseq
    %v96 = vshrl.u32 %v95, 7
    %v97 = vstv %s94
    %v98 = vadd.s32 %v96, %v97
    %v99 = vlaneseq
    %v100 = vand.u32 %v99, 127
    %v101 = vmul.u32 %v98, 2654435769
    %v102 = vmul.u32 %v100, 2246822507
    %v103 = vadd.s32 %v101, %v102
    %s104 = smul.u32 %s93, 3266489909
    %v105 = vstv %s104
    %v106 = vadd.s32 %v103, %v105
    %v107 = vshrl.u32 %v106, 16
    %v108 = vxor.u32 %v106, %v107
    %v109 = vmul.u32 %v108, 2146121005
    %v110 = vshrl.u32 %v109, 15
    %v111 = vxor.u32 %v109, %v110
    %v112 = vmul.u32 %v111, 2221713035
    %v113 = vshrl.u32 %v112, 16
    %v114 = vxor.u32 %v112, %v113
    %vm115 = vcmp.ge.u32.totalorder %v114, 429496729
    %vm116 = vcmp.gt.f32.partialorder %v88, 0.0
    %vm117 = vmand %vm115, %vm116
    %v118 = vmul.f32 %v88, 1.1111112
    %v119 = vsel %vm117, %v118, 0.0
    %v120 = vpack.c.bf16 %v119, %v119
    %v121 = vld [vmem:[%s4] sm:$0xf]
    %v122 = vld [vmem:[%s4 + $0x4] sm:$0xf]
    %v123 = vld [vmem:[%s4 + $0x8] sm:$0xf]
    %v124 = vld [vmem:[%s4 + $0xc] sm:$0xf]
    %v125 = vld [vmem:[%s4 + $0x10] sm:$0xf]
    %v126 = vld [vmem:[%s4 + $0x14] sm:$0xf]
    %v127 = vld [vmem:[%s4 + $0x18] sm:$0xf]
    %v128 = vld [vmem:[%s4 + $0x1c] sm:$0xf]
    %v129 = vld [vmem:[%s5] sm:$0x1]
    %v131 = vlaneseq
    %v132 = vshrl.u32 %v131, 7
    %v133 = vsub.s32 0, %v132
    %v134 = vrot.slane %v129, %v133
    %v144 = vunpack.c.l.b16 %v121
    %v145 = vunpack.c.l.b16 %v122
    %v146 = vunpack.c.l.b16 %v123
    %v147 = vunpack.c.l.b16 %v124
    %v148 = vunpack.c.l.b16 %v125
    %v149 = vunpack.c.l.b16 %v126
    %v150 = vunpack.c.l.b16 %v127
    %v151 = vunpack.c.l.b16 %v128
    %v152 = vpack.c.b16 %v145, %v144
    %v153 = vpack.c.b16 %v147, %v146
    %v154 = vpack.c.b16 %v149, %v148
    %v155 = vpack.c.b16 %v151, %v150
    %vm160 = vcmask 523264
    %v162 = vsel %vm160, %v120, 0
    %164 = vmatprep.subr.bf16.mxu0 0
    %165 = vmatpush1.bf16.msra.mxu0 %v152
    %166 = vmatprep.subr.bf16.mxu0 0
    %167 = vmatpush1.bf16.msra.mxu0 %v153
    %168 = vmatprep.subr.bf16.mxu0 0
    %169 = vmatpush1.bf16.msra.mxu0 %v154
    %170 = vmatprep.subr.bf16.mxu0 0
    %171 = vmatpush1.bf16.msra.mxu0 %v155
    %172 = vmatprep.subr.bf16.mxu0 0
    %173 = vmatpush1.bf16.msra.mxu0 0
    %174 = vmatprep.subr.bf16.mxu0 0
    %175 = vmatpush1.bf16.msra.mxu0 0
    %176 = vmatprep.subr.bf16.mxu0 0
    %177 = vmatpush1.bf16.msra.mxu0 0
    %178 = vmatprep.subr.bf16.mxu0 0
    %179 = vmatpush1.bf16.msra.mxu0 0
    %180 = vmatprep.subr.bf16.mxu0 0
    %181 = vmatpush1.bf16.msra.mxu0 0
    %182 = vmatprep.subr.bf16.mxu0 0
    %183 = vmatpush1.bf16.msra.mxu0 0
    %184 = vmatprep.subr.bf16.mxu0 0
    %185 = vmatpush1.bf16.msra.mxu0 0
    %186 = vmatprep.subr.bf16.mxu0 0
    %187 = vmatpush1.bf16.msra.mxu0 0
    %188 = vmatprep.subr.bf16.mxu0 0
    %189 = vmatpush1.bf16.msra.mxu0 0
    %190 = vmatprep.subr.bf16.mxu0 0
    %191 = vmatpush1.bf16.msra.mxu0 0
    %192 = vmatprep.subr.bf16.mxu0 0
    %193 = vmatpush1.bf16.msra.mxu0 0
    %194 = vmatprep.subr.bf16.mxu0 0
    %195 = vmatpush1.bf16.msra.mxu0 0
    %196 = vmatprep.mubr.bf16.mxu0 0
    %197 = vmatmul.mubr.bf16.gmra.mrb[0].mxu0 %v162
    %v198 = vpop.f32.mrb[0].mxu0
    %v199 = vadd.f32 %v134, %v198
    %v200 = vpop.f32.mrb[0].mxu0
    %v201 = vpop.f32.mrb[0].mxu0
    %v202 = vpop.f32.mrb[0].mxu0
    %203 = vdwg.mxu0
    %v204 = vsub.f32 0.0, %v199
    %v205 = vmul.f32 %v204, 1.442695
    %v206 = vpow.pop %v205
    %v207 = vadd.f32 %v206, 1.0
    %v208 = vrcp.pop %v207
    %v209 = vmul.f32 1.0, %v208
    %vm210 = vcmask 130048
    %211 = vst.msk [vmem:[#allocation4] sm:$0xff] %vm210, %v209
    // Predicated region
    $region22: #{tpu_custom_call.1} parent=1 // pred_check
      _
    $region23: #{tpu_custom_call.1} parent=1 // pred_check_branch
      %213 = sbr.rel (0) target = $region25
    $region24: #{tpu_custom_call.1} parent=1 // pred_region
      %s215 = ssub.s32 128, 128
      %216 = vsyncadd [#allocation5], %s215
      %s218 = sshll.u32 [#allocation4], 4
      %s219 = int_to_ptr.vmem [resolvable:$true] %s218
      %221 = dma.vmem_to_hbm [thread:$0]  %s219, 128, %s6, [#allocation5]
    $region25: #{tpu_custom_call.1} parent=1 // pred_fallthru
      _
    // Predicated region
    $region26: #{tpu_custom_call.1} parent=1 // pred_check
      _
    $region27: #{tpu_custom_call.1} parent=1 // pred_check_branch
      %223 = sbr.rel (0) target = $region29
    $region28: #{tpu_custom_call.1} parent=1 // pred_region
      %224 = dma.done [#allocation5], 128
    $region29: #{tpu_custom_call.1} parent=1 // pred_fallthru
      _
    %225 = vsyncpa [#allocation5], 1

</llo_original>
